<compile_context>
chip_gen: v7x
topology: tpu7x:2x2x1
jax: 0.10.0
libtpu: 0.0.40
codegen_flags: <defaults>
</compile_context>

<pallas_src>
import jax
import jax.numpy as jnp
from jax.experimental import pallas as pl
from jax.experimental.pallas import tpu as pltpu

_LANES = 128
# Double-buffered working set = 2 bufs x (x tile + out tile)
# = 4 * block_rows * D * itemsize.  Keep it under v5e's 16 MiB default scoped
# VMEM (v6e/v7x default to >= 32 MiB scoped, so this is safe everywhere).
_VMEM_TILE_BUDGET = 12 * 1024 * 1024


def _rescale_kernel(w_ref, x_ref, o_ref):
    # w_ref: (1, D) resident weight row; x_ref/o_ref: (block_rows, D) tiles.
    # One VPU multiply per element with sublane broadcast of the weight row.
    o_ref[...] = w_ref[...] * x_ref[...]


def _sublane_multiple(dtype) -> int:
    # f32 -> 8 rows/vreg, bf16 -> 16, int8/fp8 -> 32.
    return max(8, 32 // jnp.dtype(dtype).itemsize)


def _pick_block_rows(n_rows: int, n_cols: int, dtype) -> int:
    sub = _sublane_multiple(dtype)
    itemsize = jnp.dtype(dtype).itemsize
    # VMEM cap for the double-buffered x+out tiles.
    cap = _VMEM_TILE_BUDGET // (4 * n_cols * itemsize)
    cap = max(sub, (cap // sub) * sub)
    # Aim for >= ~8 grid steps (pipelining + v7x dual-TC sharding), cap tiles
    # at 2048 rows; never go below one sublane group.
    target = max(sub, (pl.cdiv(n_rows, 8) // sub) * sub)
    return max(sub, min(cap, 2048, target))


def _rescale_2d(x: jax.Array, w: jax.Array, block_rows: int | None = None) -> jax.Array:
    """x: (B, D), w: (D,) -> (B, D). Feature dim D lives on TPU lanes."""
    B, D = x.shape
    dtype = x.dtype
    w = w.astype(dtype)
    sub = _sublane_multiple(dtype)

    if block_rows is None:
        block_rows = _pick_block_rows(B, D, dtype)
    block_rows = max(sub, (block_rows // sub) * sub)  # enforce sublane alignment

    # Cover B with a whole number of blocks; pad a tail block if needed.
    n_steps = pl.cdiv(B, block_rows)
    B_pad = n_steps * block_rows
    if B_pad != B:
        x = jnp.pad(x, ((0, B_pad - B), (0, 0)))

    out = pl.pallas_call(
        _rescale_kernel,
        out_shape=jax.ShapeDtypeStruct((B_pad, D), dtype),
        grid_spec=pltpu.PrefetchScalarGridSpec(
            num_scalar_prefetch=0,
            grid=(n_steps,),
            in_specs=[
                # Weight: constant block index -> fetched once, stays resident.
                pl.BlockSpec((1, D), lambda i: (0, 0)),
                pl.BlockSpec((block_rows, D), lambda i: (i, 0)),
            ],
            out_specs=pl.BlockSpec((block_rows, D), lambda i: (i, 0)),
        ),
        compiler_params=pltpu.CompilerParams(
            dimension_semantics=("parallel",),  # shard grid across TCs (v7x)
        ),
    )(w.reshape(1, D), x)

    return out[:B] if B_pad != B else out


def rescale(x: jax.Array, weight: jax.Array, *, block_rows: int | None = None) -> jax.Array:
    """weight * x with PyTorch broadcast semantics: x is (..., dim), weight is (dim,)."""
    orig_shape = x.shape
    D = orig_shape[-1]
    assert weight.shape == (D,), f"weight must be ({D},), got {weight.shape}"

    x2 = x.reshape(-1, D)
    B = x2.shape[0]
    w = weight.astype(x.dtype)  # multiply in x.dtype; no implicit f32 upcast

    if D < _LANES and _LANES % D == 0:
        # Lane-sparse feature dim: repack rows into a lane-dense (rows, 128)
        # slab so every store is a full, unmasked vst.
        rep = _LANES // D
        pad = (-B) % rep
        if pad:
            x2 = jnp.pad(x2, ((0, pad), (0, 0)))
        x_dense = x2.reshape(-1, _LANES)
        w_dense = jnp.tile(w, rep)  # weight repeated across the 128 lanes
        out = _rescale_2d(x_dense, w_dense, block_rows=block_rows)
        out = out.reshape(-1, D)
        if pad:
            out = out[:B]
    else:
        out = _rescale_2d(x2, w, block_rows=block_rows)

    return out.reshape(orig_shape)


if __name__ == "__main__":
    key = jax.random.PRNGKey(0)
    kx, kw, kx2, kw2 = jax.random.split(key, 4)

    # Shapes consistent with the module: hidden dim = 32, batch = 8.
    B, D = 8, 32
    x = jax.random.normal(kx, (B, D), dtype=jnp.float32)
    # Module initializes weight to zeros; use a nontrivial deterministic init
    # so the broadcast multiply is actually exercised.
    weight = jax.random.normal(kw, (D,), dtype=jnp.float32)

    out = jax.block_until_ready(rescale(x, weight))
    ref = weight[None, :] * x
    assert out.shape == x.shape and out.dtype == x.dtype
    assert jnp.allclose(out, ref, atol=1e-6, rtol=1e-6)

    # Zero-initialized weight (as in the module) gives zeros.
    out_zero = jax.block_until_ready(rescale(x, jnp.zeros((D,), jnp.float32)))
    assert jnp.allclose(out_zero, jnp.zeros_like(x))

    # Second case: extra leading dims, row count not divisible by the block,
    # lane-dense feature dim (D = 128) -> exercises the padded-tail path.
    x2 = jax.random.normal(kx2, (3, 7, 128), dtype=jnp.float32)
    w2 = jax.random.normal(kw2, (128,), dtype=jnp.float32)
    out2 = jax.block_until_ready(rescale(x2, w2))
    assert out2.shape == x2.shape and out2.dtype == x2.dtype
    assert jnp.allclose(out2, w2 * x2, atol=1e-6, rtol=1e-6)

    print("KERNEL_OK")
</pallas_src>

<mosaic_0001>
module attributes {stable_mosaic.version = 11 : i64} {
  func.func @_rescale_kernel(%arg0: i32, %arg1: memref<1x128xf32, #tpu.memory_space<vmem>>, %arg2: memref<8x128xf32, #tpu.memory_space<vmem>>, %arg3: memref<8x128xf32, #tpu.memory_space<vmem>>) attributes {dimension_semantics = [#tpu.dimension_semantics<parallel>], iteration_bounds = array<i64: 1>, scalar_prefetch = 0 : i64, scratch_operands = 0 : i64, tpu.core_type = #tpu.core_type<tc>, window_params = [{pipeline_mode = #tpu.pipeline_mode<synchronous>, transform_indices = @transform_0, window_bounds = array<i64: 1, 128>}, {transform_indices = @transform_1, window_bounds = array<i64: 8, 128>}, {transform_indices = @transform_2, window_bounds = array<i64: 8, 128>}]} {
    %c0 = arith.constant 0 : index
    %c0_0 = arith.constant 0 : index
    %0 = vector.load %arg1[%c0, %c0_0] : memref<1x128xf32, #tpu.memory_space<vmem>>, vector<1x128xf32>
    %c0_1 = arith.constant 0 : index
    %c0_2 = arith.constant 0 : index
    %1 = vector.load %arg2[%c0_1, %c0_2] : memref<8x128xf32, #tpu.memory_space<vmem>>, vector<8x128xf32>
    %2 = vector.broadcast %0 : vector<1x128xf32> to vector<8x128xf32>
    %3 = arith.mulf %2, %1 : vector<8x128xf32>
    %c0_3 = arith.constant 0 : index
    %c0_4 = arith.constant 0 : index
    %4 = vector.load %arg3[%c0_3, %c0_4] : memref<8x128xf32, #tpu.memory_space<vmem>>, vector<8x128xf32>
    tpu.vector_store %arg3[%c0_3, %c0_4], %3 {strides = array<i32>} : memref<8x128xf32, #tpu.memory_space<vmem>>, vector<8x128xf32>,
    return
  }
  func.func @transform_0(%arg0: i32) -> (i32, i32) {
    %c0_i32 = arith.constant 0 : i32
    %c0_i32_0 = arith.constant 0 : i32
    %c0_i32_1 = arith.constant 0 : i32
    return %c0_i32, %c0_i32_0 : i32, i32
  }
  func.func @transform_1(%arg0: i32) -> (i32, i32) {
    %c0_i32 = arith.constant 0 : i32
    %c0_i32_0 = arith.constant 0 : i32
    return %arg0, %c0_i32 : i32, i32
  }
  func.func @transform_2(%arg0: i32) -> (i32, i32) {
    %c0_i32 = arith.constant 0 : i32
    %c0_i32_0 = arith.constant 0 : i32
    return %arg0, %c0_i32 : i32, i32
  }
}

</mosaic_0001>

<llo_original>
// kernel: tpu_custom_call.1
$region0: #{tpu_custom_call.1}
  #allocation0 [shape = 'u32[]', space=smem, size = 0x4, offset = 0x4, fixed_abs, tag = 'smem constant byte address 0x4 - core index']
  #allocation1 [shape = 'u32[144,128]{1,0:T(1,128)}', space=vmem, size = 0x12000, scoped, tag = 'internal scratch']
  %s0 = inlined_call_operand.hbm [shape: f32[1,128], index: 0, kind: input, shape index: {}]
  %s1 = inlined_call_operand.hbm [shape: f32[8,128], index: 1, kind: input, shape index: {}]
  %s2 = inlined_call_operand.hbm [shape: f32[8,128], index: 2, kind: output, shape index: {}]
  %s3 = sld [smem:[#allocation0]]
  $region26: #{tpu_custom_call.1} parent=0
    _
  %s5 = ssub.s32 1, %s3
  %s6 = scalar_select 0, %s5, %s3
  $region1: #{tpu_custom_call.1} parent=0
    #allocation2 [shape = 'u8[512]{0}', space=vmem, size = 0x400, scoped, tag = 'input window, operand 0, single buffered']
    #allocation3 [shape = 's32[1]{0}', space=sflag, size = 0x4, scoped, tag = 'scoped memory for tpu_custom_call.1']
    #allocation4 [shape = 's32[1]{0}', space=sflag, size = 0x4, scoped, tag = 'scoped memory for tpu_custom_call.1']
    #allocation5 [shape = 'u8[4096]{0}', space=vmem, size = 0x1000, scoped, tag = 'input window, operand 1, single buffered']
    #allocation6 [shape = 's32[1]{0}', space=sflag, size = 0x4, scoped, tag = 'scoped memory for tpu_custom_call.1']
    #allocation7 [shape = 'u8[4096]{0}', space=vmem, size = 0x1000, scoped, tag = 'output window, operand 0, single buffered']
    %7 = vsyncpa [#allocation3], 0
    %8 = vsyncpa [#allocation6], 0
    %9 = vsyncpa [#allocation4], 0
    // Predicated region
    $region2: #{tpu_custom_call.1} parent=1 // pred_check
      _
    $region3: #{tpu_custom_call.1} parent=1 // pred_check_branch
      %11 = sbr.rel (0) target = $region5
    $region4: #{tpu_custom_call.1} parent=1 // pred_region
      %s13 = ssub.s32 16, 16
      %14 = vsyncadd [#allocation3], %s13
      %s16 = sshll.u32 [#allocation2], 4
      %s17 = int_to_ptr.vmem [resolvable:$true] %s16
      %19 = dma.hbm_to_vmem [thread:$0]  %s0, 16, %s17, [#allocation3]
    $region5: #{tpu_custom_call.1} parent=1 // pred_fallthru
      _
    // Predicated region
    $region6: #{tpu_custom_call.1} parent=1 // pred_check
      _
    $region7: #{tpu_custom_call.1} parent=1 // pred_check_branch
      %21 = sbr.rel (0) target = $region9
    $region8: #{tpu_custom_call.1} parent=1 // pred_region
      %s23 = ssub.s32 128, 128
      %24 = vsyncadd [#allocation6], %s23
      %s26 = sshll.u32 [#allocation5], 4
      %s27 = int_to_ptr.vmem [resolvable:$true] %s26
      %29 = dma.hbm_to_vmem [thread:$0]  %s1, 128, %s27, [#allocation6]
    $region9: #{tpu_custom_call.1} parent=1 // pred_fallthru
      _
    // Predicated region
    $region10: #{tpu_custom_call.1} parent=1 // pred_check
      _
    $region11: #{tpu_custom_call.1} parent=1 // pred_check_branch
      %31 = sbr.rel (0) target = $region13
    $region12: #{tpu_custom_call.1} parent=1 // pred_region
      %32 = dma.done [#allocation3], 16
    $region13: #{tpu_custom_call.1} parent=1 // pred_fallthru
      _
    // Predicated region
    $region14: #{tpu_custom_call.1} parent=1 // pred_check
      _
    $region15: #{tpu_custom_call.1} parent=1 // pred_check_branch
      %34 = sbr.rel (0) target = $region17
    $region16: #{tpu_custom_call.1} parent=1 // pred_region
      %35 = dma.done [#allocation6], 128
    $region17: #{tpu_custom_call.1} parent=1 // pred_fallthru
      _
    %v36 = vld [vmem:[#allocation2] sm:$0x1]
    %v37 = vld [vmem:[#allocation5] sm:$0xff]
    %v39 = vlaneseq
    %v40 = vshrl.u32 %v39, 7
    %v41 = vsub.s32 0, %v40
    %v42 = vrot.slane %v36, %v41
    %v44 = vmul.f32 %v42, %v37
    %45 = vst [vmem:[#allocation7] sm:$0xff] %v44
    // Predicated region
    $region18: #{tpu_custom_call.1} parent=1 // pred_check
      _
    $region19: #{tpu_custom_call.1} parent=1 // pred_check_branch
      %47 = sbr.rel (0) target = $region21
    $region20: #{tpu_custom_call.1} parent=1 // pred_region
      %s49 = ssub.s32 128, 128
      %50 = vsyncadd [#allocation4], %s49
      %s52 = sshll.u32 [#allocation7], 4
      %s53 = int_to_ptr.vmem [resolvable:$true] %s52
      %55 = dma.vmem_to_hbm [thread:$0]  %s53, 128, %s2, [#allocation4]
    $region21: #{tpu_custom_call.1} parent=1 // pred_fallthru
      _
    // Predicated region
    $region22: #{tpu_custom_call.1} parent=1 // pred_check
      _
    $region23: #{tpu_custom_call.1} parent=1 // pred_check_branch
      %57 = sbr.rel (0) target = $region25
    $region24: #{tpu_custom_call.1} parent=1 // pred_region
      %58 = dma.done [#allocation4], 128
    $region25: #{tpu_custom_call.1} parent=1 // pred_fallthru
      _
    %59 = vsyncpa [#allocation3], 1
    %60 = vsyncpa [#allocation6], 1
    %61 = vsyncpa [#allocation4], 1

</llo_original>
